<compile_context>
chip_gen: v5e
topology: v5e:2x2
jax: 0.10.0
libtpu: 0.0.40
codegen_flags: <defaults>
</compile_context>

<pallas_src>
import jax
import jax.numpy as jnp
from jax.experimental import pallas as pl
from jax.experimental.pallas import tpu as pltpu


# --------------------------------------------------------------------------
# Stage 1 (tiny, once per call):
#   shift   = SiLU(c) @ W_shift^T + b_shift
#   scale1p = 1 + SiLU(c) @ W_scale^T + b_scale
# The adaLN weight is pre-split into shift/scale halves in the wrapper, so
# there is no in-kernel lane slice of a (B, 2H) result.
# --------------------------------------------------------------------------
def _adaln_kernel(c_ref, ws_ref, bs_ref, wc_ref, bc_ref, shift_ref, scale1p_ref):
    c = c_ref[...].astype(jnp.float32)                    # (B, H)
    silu = c * jax.nn.sigmoid(c)                          # SiLU on EUP/VPU
    silu_m = silu.astype(ws_ref.dtype)
    shift_ref[...] = (
        jnp.dot(silu_m, ws_ref[...], preferred_element_type=jnp.float32)
        + bs_ref[...])
    scale1p_ref[...] = 1.0 + (
        jnp.dot(silu_m, wc_ref[...], preferred_element_type=jnp.float32)
        + bc_ref[...])


# --------------------------------------------------------------------------
# Stage 2 (hot): LayerNorm + folded-modulation matmul per (batch, token tile).
#   x_ref:    (TILE_T, H)   current token tile (batch dim squeezed)
#   wb_ref:   (H, O)        per-batch folded weight  = diag(1+scale) @ W_lin^T
#   bias_ref: (1, O)        per-batch folded bias    = shift @ W_lin^T + b_lin
#   o_ref:    (TILE_T, O)
# --------------------------------------------------------------------------
def _final_kernel(x_ref, wb_ref, bias_ref, o_ref):
    x = x_ref[...].astype(jnp.float32)                    # (TILE_T, H)
    inv_h = 1.0 / x.shape[-1]

    # One-pass LN statistics, computed in f32 (x promoted first), so the
    # E[x^2]-E[x]^2 form stays stable for realistic activations.
    s = jnp.sum(x, axis=-1, keepdims=True)
    sq = jnp.sum(x * x, axis=-1, keepdims=True)
    mean = s * inv_h
    var = jnp.maximum(sq * inv_h - mean * mean, 0.0)
    r = jax.lax.rsqrt(var + 1e-6)

    # Folded affine: (x - mean) * r == x*r - mean*r  -> one live (TILE_T, H)
    # f32 temporary, easing the v7x 64 MiB VMEM budget at large tiles.
    xn = x * r - mean * r

    # Single MXU matmul; the adaLN modulation is already folded into wb/bias,
    # so there is no per-element "* (1+scale) + shift" VPU pass here.
    y = jnp.dot(xn.astype(wb_ref.dtype), wb_ref[...],
                preferred_element_type=jnp.float32)       # (TILE_T, O)
    o_ref[...] = (y + bias_ref[...]).astype(o_ref.dtype)


# --------------------------------------------------------------------------
# One-time parameter layout prep (cache the result; do NOT rebuild per call).
# --------------------------------------------------------------------------
def make_final_layer_params(w_ada, b_ada, w_lin, b_lin, *, mxu_dtype=jnp.bfloat16):
    """w_ada: (2H, H); b_ada: (2H,); w_lin: (O, H); b_lin: (O,).

    mxu_dtype is the dtype of MXU operands (bf16 recommended on v5e/v6e/v7x;
    pass jnp.float32 for exact-precision checks)."""
    H = w_ada.shape[1]
    return dict(
        w_shift_t=jnp.asarray(w_ada[:H], mxu_dtype).T,            # (H, H)
        w_scale_t=jnp.asarray(w_ada[H:], mxu_dtype).T,            # (H, H)
        b_shift=jnp.asarray(b_ada[:H], jnp.float32).reshape(1, H),
        b_scale=jnp.asarray(b_ada[H:], jnp.float32).reshape(1, H),
        w_lin_t=jnp.asarray(w_lin, jnp.float32).T,                # (H, O), f32 for fold
        b_lin=jnp.asarray(b_lin, jnp.float32).reshape(1, -1),     # (1, O)
    )


# --------------------------------------------------------------------------
# Forward: x (B, T, H), c (B, H) -> (B, T, O).  Wrap in jax.jit in production.
# --------------------------------------------------------------------------
def final_layer_apply(x, c, params, *, tile_t=1024,
                      vmem_limit_bytes=48 * 1024 * 1024):
    B, T, H = x.shape
    O = params["w_lin_t"].shape[1]
    mxu_dtype = params["w_shift_t"].dtype

    # ---- Stage 1: adaLN modulation (tiny, exactly once per call) ----
    shift, scale1p = pl.pallas_call(
        _adaln_kernel,
        out_shape=(jax.ShapeDtypeStruct((B, H), jnp.float32),
                   jax.ShapeDtypeStruct((B, H), jnp.float32)),
        grid=(1,),
        in_specs=[
            pl.BlockSpec((B, H), lambda i: (0, 0)),
            pl.BlockSpec((H, H), lambda i: (0, 0)),
            pl.BlockSpec((1, H), lambda i: (0, 0)),
            pl.BlockSpec((H, H), lambda i: (0, 0)),
            pl.BlockSpec((1, H), lambda i: (0, 0)),
        ],
        out_specs=(pl.BlockSpec((B, H), lambda i: (0, 0)),
                   pl.BlockSpec((B, H), lambda i: (0, 0))),
        compiler_params=pltpu.CompilerParams(dimension_semantics=("arbitrary",)),
    )(c, params["w_shift_t"], params["b_shift"],
      params["w_scale_t"], params["b_scale"])

    # ---- Fold the modulation into per-batch weight / bias (tiny XLA ops) ----
    #   wb[b]    = diag(1+scale[b]) @ W_lin^T              -> (B, H, O)
    #   biasb[b] = shift[b] @ W_lin^T + b_lin              -> (B, 1, O)
    # Only B*H*O work; the lane->sublane broadcast of scale1p is layout-awkward
    # inside a TPU kernel but free for XLA at this size, so it lives here.
    w_lin_t = params["w_lin_t"]                                   # (H, O) f32
    wb = (scale1p[:, :, None] * w_lin_t[None, :, :]).astype(mxu_dtype)
    biasb = (shift @ w_lin_t + params["b_lin"])[:, None, :]       # (B, 1, O) f32

    # ---- Stage 2: LN + folded matmul, tiled over (batch, token tiles) ----
    if T <= tile_t:
        tile_t = T
    else:
        tile_t = max(16, (tile_t // 16) * 16)   # multiple of 16: bf16 sublane packing
    # NOTE(v7x): if B * cdiv(T, tile_t) ends up 1 / odd, shrink tile_t so both
    # "parallel" axes shard cleanly over the 2 TensorCores.
    grid = (B, pl.cdiv(T, tile_t))

    out = pl.pallas_call(
        _final_kernel,
        out_shape=jax.ShapeDtypeStruct((B, T, O), x.dtype),
        grid=grid,
        in_specs=[
            pl.BlockSpec((None, tile_t, H), lambda b, t: (b, t, 0)),  # x tile
            pl.BlockSpec((None, H, O), lambda b, t: (b, 0, 0)),       # W_b (resident per b)
            pl.BlockSpec((None, 1, O), lambda b, t: (b, 0, 0)),       # bias_b
        ],
        out_specs=pl.BlockSpec((None, tile_t, O), lambda b, t: (b, t, 0)),
        compiler_params=pltpu.CompilerParams(
            dimension_semantics=("parallel", "parallel"),
            vmem_limit_bytes=vmem_limit_bytes),
    )(x, wb, biasb)
    return out


def final_layer(x, c, w_ada, b_ada, w_lin, b_lin, *, mxu_dtype=jnp.bfloat16,
                tile_t=1024, vmem_limit_bytes=48 * 1024 * 1024):
    """Convenience wrapper: prep + apply.  Cache make_final_layer_params in
    real use so the layout prep is not repeated per call."""
    params = make_final_layer_params(w_ada, b_ada, w_lin, b_lin, mxu_dtype=mxu_dtype)
    return final_layer_apply(x, c, params, tile_t=tile_t,
                             vmem_limit_bytes=vmem_limit_bytes)


# --------------------------------------------------------------------------
# Pure-JAX reference mirroring the PyTorch forward.
# --------------------------------------------------------------------------
def reference_final_layer(x, c, w_ada, b_ada, w_lin, b_lin):
    mod = jax.nn.silu(c) @ w_ada.T + b_ada
    H = x.shape[-1]
    shift, scale = mod[:, :H], mod[:, H:]
    mean = jnp.mean(x, axis=-1, keepdims=True)
    var = jnp.mean((x - mean) ** 2, axis=-1, keepdims=True)
    xn = (x - mean) / jnp.sqrt(var + 1e-6)
    xm = xn * (1.0 + scale[:, None, :]) + shift[:, None, :]
    return xm @ w_lin.T + b_lin


if __name__ == "__main__":
    B, T, H, O = 2, 8, 32, 16
    key = jax.random.PRNGKey(0)
    kx, kc, k1, k2, k3, k4 = jax.random.split(key, 6)

    x = jax.random.normal(kx, (B, T, H), dtype=jnp.float32)
    c = jax.random.normal(kc, (B, H), dtype=jnp.float32)

    # Parameter shapes match nn.Linear(H, 2H) and nn.Linear(H, O).
    w_ada = jax.random.normal(k1, (2 * H, H), dtype=jnp.float32) * (1.0 / jnp.sqrt(H))
    b_ada = jax.random.normal(k2, (2 * H,), dtype=jnp.float32) * 0.01
    w_lin = jax.random.normal(k3, (O, H), dtype=jnp.float32) * (1.0 / jnp.sqrt(H))
    b_lin = jax.random.normal(k4, (O,), dtype=jnp.float32) * 0.01

    ref = reference_final_layer(x, c, w_ada, b_ada, w_lin, b_lin)

    # Exact-precision path (f32 MXU operands): must match the f32 reference.
    out_f32 = final_layer(x, c, w_ada, b_ada, w_lin, b_lin,
                          mxu_dtype=jnp.float32)
    jax.block_until_ready(out_f32)
    assert out_f32.shape == (B, T, O)
    assert jnp.allclose(out_f32, ref, atol=1e-4, rtol=1e-4), "mismatch vs reference (f32)"

    # Performance path (default bf16 MXU operands, f32 accumulation): loose check.
    out_bf = final_layer(x, c, w_ada, b_ada, w_lin, b_lin)
    jax.block_until_ready(out_bf)
    assert out_bf.shape == (B, T, O)
    assert jnp.allclose(out_bf, ref, atol=1e-1, rtol=1e-1), "mismatch vs reference (bf16)"

    print("KERNEL_OK")
</pallas_src>

<mosaic_0001>
module attributes {stable_mosaic.version = 11 : i64} {
  func.func @_adaln_kernel(%arg0: i32, %arg1: memref<2x32xf32, #tpu.memory_space<vmem>>, %arg2: memref<32x32xf32, #tpu.memory_space<vmem>>, %arg3: memref<1x32xf32, #tpu.memory_space<vmem>>, %arg4: memref<32x32xf32, #tpu.memory_space<vmem>>, %arg5: memref<1x32xf32, #tpu.memory_space<vmem>>, %arg6: memref<2x32xf32, #tpu.memory_space<vmem>>, %arg7: memref<2x32xf32, #tpu.memory_space<vmem>>) attributes {dimension_semantics = [#tpu.dimension_semantics<arbitrary>], iteration_bounds = array<i64: 1>, scalar_prefetch = 0 : i64, scratch_operands = 0 : i64, tpu.core_type = #tpu.core_type<tc>, window_params = [{pipeline_mode = #tpu.pipeline_mode<synchronous>, transform_indices = @transform_0, window_bounds = array<i64: 2, 32>}, {pipeline_mode = #tpu.pipeline_mode<synchronous>, transform_indices = @transform_1, window_bounds = array<i64: 32, 32>}, {pipeline_mode = #tpu.pipeline_mode<synchronous>, transform_indices = @transform_2, window_bounds = array<i64: 1, 32>}, {pipeline_mode = #tpu.pipeline_mode<synchronous>, transform_indices = @transform_3, window_bounds = array<i64: 32, 32>}, {pipeline_mode = #tpu.pipeline_mode<synchronous>, transform_indices = @transform_4, window_bounds = array<i64: 1, 32>}, {pipeline_mode = #tpu.pipeline_mode<synchronous>, transform_indices = @transform_5, window_bounds = array<i64: 2, 32>}, {pipeline_mode = #tpu.pipeline_mode<synchronous>, transform_indices = @transform_6, window_bounds = array<i64: 2, 32>}]} {
    %c0 = arith.constant 0 : index
    %c0_0 = arith.constant 0 : index
    %0 = vector.load %arg1[%c0, %c0_0] : memref<2x32xf32, #tpu.memory_space<vmem>>, vector<2x32xf32>
    %1 = arith.negf %0 : vector<2x32xf32>
    %2 = math.exp %1 : vector<2x32xf32>
    %cst = arith.constant 1.000000e+00 : f32
    %3 = vector.broadcast %cst : f32 to vector<2x32xf32>
    %4 = arith.addf %3, %2 : vector<2x32xf32>
    %5 = arith.divf %3, %4 : vector<2x32xf32>
    %6 = arith.mulf %0, %5 : vector<2x32xf32>
    %c0_1 = arith.constant 0 : index
    %c0_2 = arith.constant 0 : index
    %7 = vector.load %arg2[%c0_1, %c0_2] : memref<32x32xf32, #tpu.memory_space<vmem>>, vector<32x32xf32>
    %cst_3 = arith.constant dense<0.000000e+00> : vector<2x32xf32>
    %8 = tpu.matmul %6, %7, %cst_3 {dimension_numbers = #tpu.dot_dimension_numbers<[1], [0], [0], [1], [0, 0, 1, 1], [], []>} : vector<2x32xf32>, vector<32x32xf32>, vector<2x32xf32> -> vector<2x32xf32>
    %c0_4 = arith.constant 0 : index
    %c0_5 = arith.constant 0 : index
    %9 = vector.load %arg3[%c0_4, %c0_5] : memref<1x32xf32, #tpu.memory_space<vmem>>, vector<1x32xf32>
    %10 = vector.broadcast %9 : vector<1x32xf32> to vector<2x32xf32>
    %11 = arith.addf %8, %10 : vector<2x32xf32>
    %c0_6 = arith.constant 0 : index
    %c0_7 = arith.constant 0 : index
    %12 = vector.load %arg6[%c0_6, %c0_7] : memref<2x32xf32, #tpu.memory_space<vmem>>, vector<2x32xf32>
    tpu.vector_store %arg6[%c0_6, %c0_7], %11 {strides = array<i32>} : memref<2x32xf32, #tpu.memory_space<vmem>>, vector<2x32xf32>,
    %c0_8 = arith.constant 0 : index
    %c0_9 = arith.constant 0 : index
    %13 = vector.load %arg4[%c0_8, %c0_9] : memref<32x32xf32, #tpu.memory_space<vmem>>, vector<32x32xf32>
    %cst_10 = arith.constant dense<0.000000e+00> : vector<2x32xf32>
    %14 = tpu.matmul %6, %13, %cst_10 {dimension_numbers = #tpu.dot_dimension_numbers<[1], [0], [0], [1], [0, 0, 1, 1], [], []>} : vector<2x32xf32>, vector<32x32xf32>, vector<2x32xf32> -> vector<2x32xf32>
    %c0_11 = arith.constant 0 : index
    %c0_12 = arith.constant 0 : index
    %15 = vector.load %arg5[%c0_11, %c0_12] : memref<1x32xf32, #tpu.memory_space<vmem>>, vector<1x32xf32>
    %16 = vector.broadcast %15 : vector<1x32xf32> to vector<2x32xf32>
    %17 = arith.addf %14, %16 : vector<2x32xf32>
    %cst_13 = arith.constant 1.000000e+00 : f32
    %18 = vector.broadcast %cst_13 : f32 to vector<2x32xf32>
    %19 = arith.addf %18, %17 : vector<2x32xf32>
    %c0_14 = arith.constant 0 : index
    %c0_15 = arith.constant 0 : index
    %20 = vector.load %arg7[%c0_14, %c0_15] : memref<2x32xf32, #tpu.memory_space<vmem>>, vector<2x32xf32>
    tpu.vector_store %arg7[%c0_14, %c0_15], %19 {strides = array<i32>} : memref<2x32xf32, #tpu.memory_space<vmem>>, vector<2x32xf32>,
    return
  }
  func.func @transform_0(%arg0: i32) -> (i32, i32) {
    %c0_i32 = arith.constant 0 : i32
    %c0_i32_0 = arith.constant 0 : i32
    %c0_i32_1 = arith.constant 0 : i32
    return %c0_i32, %c0_i32_0 : i32, i32
  }
  func.func @transform_1(%arg0: i32) -> (i32, i32) {
    %c0_i32 = arith.constant 0 : i32
    %c0_i32_0 = arith.constant 0 : i32
    %c0_i32_1 = arith.constant 0 : i32
    return %c0_i32, %c0_i32_0 : i32, i32
  }
  func.func @transform_2(%arg0: i32) -> (i32, i32) {
    %c0_i32 = arith.constant 0 : i32
    %c0_i32_0 = arith.constant 0 : i32
    %c0_i32_1 = arith.constant 0 : i32
    return %c0_i32, %c0_i32_0 : i32, i32
  }
  func.func @transform_3(%arg0: i32) -> (i32, i32) {
    %c0_i32 = arith.constant 0 : i32
    %c0_i32_0 = arith.constant 0 : i32
    %c0_i32_1 = arith.constant 0 : i32
    return %c0_i32, %c0_i32_0 : i32, i32
  }
  func.func @transform_4(%arg0: i32) -> (i32, i32) {
    %c0_i32 = arith.constant 0 : i32
    %c0_i32_0 = arith.constant 0 : i32
    %c0_i32_1 = arith.constant 0 : i32
    return %c0_i32, %c0_i32_0 : i32, i32
  }
  func.func @transform_5(%arg0: i32) -> (i32, i32) {
    %c0_i32 = arith.constant 0 : i32
    %c0_i32_0 = arith.constant 0 : i32
    %c0_i32_1 = arith.constant 0 : i32
    return %c0_i32, %c0_i32_0 : i32, i32
  }
  func.func @transform_6(%arg0: i32) -> (i32, i32) {
    %c0_i32 = arith.constant 0 : i32
    %c0_i32_0 = arith.constant 0 : i32
    %c0_i32_1 = arith.constant 0 : i32
    return %c0_i32, %c0_i32_0 : i32, i32
  }
}

</mosaic_0001>

<llo_original>
// kernel: tpu_custom_call.1
$region0: #{tpu_custom_call.1}
  #allocation0 [shape = 'u32[]', space=smem, size = 0x4, offset = 0x4, fixed_abs, tag = 'smem constant byte address 0x4 - core index']
  #allocation1 [shape = 'u32[72,128]{1,0:T(1,128)}', space=vmem, size = 0x9000, scoped, tag = 'internal scratch']
  %s0 = inlined_call_operand.hbm [shape: f32[2,32], index: 0, kind: input, shape index: {}]
  %s1 = inlined_call_operand.hbm [shape: f32[32,32], index: 1, kind: input, shape index: {}]
  %s2 = inlined_call_operand.vmem [shape: f32[1,32], index: 2, kind: input, shape index: {}]
  %s3 = inlined_call_operand.hbm [shape: f32[32,32], index: 3, kind: input, shape index: {}]
  %s4 = inlined_call_operand.vmem [shape: f32[1,32], index: 4, kind: input, shape index: {}]
  %s5 = inlined_call_operand.hbm [shape: f32[2,32], index: 5, kind: output, shape index: {0}]
  %s6 = inlined_call_operand.hbm [shape: f32[2,32], index: 6, kind: output, shape index: {1}]
  %7 = xla_tuple %s5, %s6
  %s8 = sld [smem:[#allocation0]]
  $region50: #{tpu_custom_call.1} parent=0
    _
  %s10 = ssub.s32 1, %s8
  %s11 = scalar_select 0, %s10, %s8
  $region1: #{tpu_custom_call.1} parent=0
    #allocation2 [shape = 'u8[1024]{0}', space=vmem, size = 0x400, scoped, tag = 'input window, operand 0, single buffered']
    #allocation3 [shape = 's32[1]{0}', space=sflag, size = 0x4, scoped, tag = 'scoped memory for tpu_custom_call.1']
    #allocation4 [shape = 's32[1]{0}', space=sflag, size = 0x4, scoped, tag = 'scoped memory for tpu_custom_call.1']
    #allocation5 [shape = 'u8[16384]{0}', space=vmem, size = 0x4000, scoped, tag = 'input window, operand 1, single buffered']
    #allocation6 [shape = 's32[1]{0}', space=sflag, size = 0x4, scoped, tag = 'scoped memory for tpu_custom_call.1']
    #allocation7 [shape = 'u8[16384]{0}', space=vmem, size = 0x4000, scoped, tag = 'input window, operand 3, single buffered']
    #allocation8 [shape = 'u8[1024]{0}', space=vmem, size = 0x400, scoped, tag = 'output window, operand 0, single buffered']
    #allocation9 [shape = 'u8[1024]{0}', space=vmem, size = 0x400, scoped, tag = 'output window, operand 1, single buffered']
    #allocation10 [shape = 's32[1]{0}', space=sflag, size = 0x4, scoped, tag = 'scoped memory for tpu_custom_call.1']
    %12 = vsyncpa [#allocation3], 0
    %13 = vsyncpa [#allocation6], 0
    %14 = vsyncpa [#allocation4], 0
    %15 = vsyncpa [#allocation10], 0
    // Predicated region
    $region2: #{tpu_custom_call.1} parent=1 // pred_check
      _
    $region3: #{tpu_custom_call.1} parent=1 // pred_check_branch
      %17 = sbr.rel (0) target = $region5
    $region4: #{tpu_custom_call.1} parent=1 // pred_region
      %19 = vsyncadd [#allocation3], 0
      %s21 = sshll.u32 %s0, 4
      %s22 = int_to_ptr.hbm [resolvable:$true] %s21
      %s23 = sshll.u32 [#allocation2], 4
      %s24 = int_to_ptr.vmem [resolvable:$true] %s23
      %26 = dma.hbm_to_vmem [thread:$0]  %s22, 32, %s24, [#allocation3]
    $region5: #{tpu_custom_call.1} parent=1 // pred_fallthru
      _
    // Predicated region
    $region6: #{tpu_custom_call.1} parent=1 // pred_check
      _
    $region7: #{tpu_custom_call.1} parent=1 // pred_check_branch
      %28 = sbr.rel (0) target = $region9
    $region8: #{tpu_custom_call.1} parent=1 // pred_region
      %30 = vsyncadd [#allocation6], 0
      %s31 = sshll.u32 %s1, 4
      %s32 = int_to_ptr.hbm [resolvable:$true] %s31
      %s33 = sshll.u32 [#allocation5], 4
      %s34 = int_to_ptr.vmem [resolvable:$true] %s33
      %39 = dma.hbm_to_vmem [thread:$0]  %s32, 512, %s34, [#allocation6], 128, 128, 8
    $region9: #{tpu_custom_call.1} parent=1 // pred_fallthru
      _
    // Predicated region
    $region10: #{tpu_custom_call.1} parent=1 // pred_check
      _
    $region11: #{tpu_custom_call.1} parent=1 // pred_check_branch
      %41 = sbr.rel (0) target = $region13
    $region12: #{tpu_custom_call.1} parent=1 // pred_region
      _
    $region13: #{tpu_custom_call.1} parent=1 // pred_fallthru
      _
    // Predicated region
    $region14: #{tpu_custom_call.1} parent=1 // pred_check
      _
    $region15: #{tpu_custom_call.1} parent=1 // pred_check_branch
      %43 = sbr.rel (0) target = $region17
    $region16: #{tpu_custom_call.1} parent=1 // pred_region
      %45 = vsyncadd [#allocation6], 0
      %s46 = sshll.u32 %s3, 4
      %s47 = int_to_ptr.hbm [resolvable:$true] %s46
      %s48 = sshll.u32 [#allocation7], 4
      %s49 = int_to_ptr.vmem [resolvable:$true] %s48
      %54 = dma.hbm_to_vmem [thread:$0]  %s47, 512, %s49, [#allocation6], 128, 128, 8
    $region17: #{tpu_custom_call.1} parent=1 // pred_fallthru
      _
    // Predicated region
    $region18: #{tpu_custom_call.1} parent=1 // pred_check
      _
    $region19: #{tpu_custom_call.1} parent=1 // pred_check_branch
      %56 = sbr.rel (0) target = $region21
    $region20: #{tpu_custom_call.1} parent=1 // pred_region
      _
    $region21: #{tpu_custom_call.1} parent=1 // pred_fallthru
      _
    // Predicated region
    $region22: #{tpu_custom_call.1} parent=1 // pred_check
      _
    $region23: #{tpu_custom_call.1} parent=1 // pred_check_branch
      %58 = sbr.rel (0) target = $region25
    $region24: #{tpu_custom_call.1} parent=1 // pred_region
      %60 = dma.done [#allocation3], 32
    $region25: #{tpu_custom_call.1} parent=1 // pred_fallthru
      _
    // Predicated region
    $region26: #{tpu_custom_call.1} parent=1 // pred_check
      _
    $region27: #{tpu_custom_call.1} parent=1 // pred_check_branch
      %62 = sbr.rel (0) target = $region29
    $region28: #{tpu_custom_call.1} parent=1 // pred_region
      %64 = dma.done [#allocation6], 512
    $region29: #{tpu_custom_call.1} parent=1 // pred_fallthru
      _
    // Predicated region
    $region30: #{tpu_custom_call.1} parent=1 // pred_check
      _
    $region31: #{tpu_custom_call.1} parent=1 // pred_check_branch
      %66 = sbr.rel (0) target = $region33
    $region32: #{tpu_custom_call.1} parent=1 // pred_region
      %68 = dma.done [#allocation6], 512
    $region33: #{tpu_custom_call.1} parent=1 // pred_fallthru
      _
    %v69 = vld [vmem:[#allocation2] sm:$0x3]
    %v70 = vxor.u32 %v69, 2147483648
    %v71 = vmul.f32 %v70, 1.442695
    %v72 = vpow.pop %v71
    %v73 = vadd.f32 %v72, 1.0
    %v74 = vrcp.pop %v73
    %v75 = vmul.f32 %v73, %v74
    %v76 = vsub.f32 1.0, %v75
    %v77 = vmul.f32 %v74, %v76
    %v78 = vadd.f32 %v74, %v77
    %vm79 = vweird.f32 %v73
    %vm80 = vweird.f32 %v74
    %vm81 = vmor %vm79, %vm80
    %v82 = vsel %vm81, %v74, %v78
    %v83 = vand.u32 2147483647, %v73
    %vm84 = vcmp.eq.f32.partialorder %v83, 8.507059e+37
    %v85 = vand.u32 %v73, 2147483648
    %v86 = vor.u32 1.1754944e-38, %v85
    %v87 = vsel %vm84, %v86, %v82
    %v88 = vmul.f32 1.0, %v87
    %v89 = vmul.f32 %v69, %v88
    %v90 = vld [vmem:[#allocation5] sm:$0xff]
    %v91 = vld [vmem:[#allocation5 + $0x8] sm:$0xff]
    %v92 = vld [vmem:[#allocation5 + $0x10] sm:$0xff]
    %v93 = vld [vmem:[#allocation5 + $0x18] sm:$0xff]
    %v94 = vld [vmem:[%s2] sm:$0x1]
    %v96 = vperm.slane %v94, 0
    %vm98 = vcmask 261120
    %v100 = vsel %vm98, %v89, 0
    %102 = vmatpush.msra.mxu0 0.0
    %103 = vmatpush.msra.mxu0 0.0
    %104 = vmatpush.msra.mxu0 0.0
    %105 = vmatpush.msra.mxu0 0.0
    %106 = vmatpush.msra.mxu0 0.0
    %107 = vmatpush.msra.mxu0 0.0
    %108 = vmatpush.msra.mxu0 0.0
    %109 = vmatpush.msra.mxu0 0.0
    %110 = vmatpush.msra.mxu0 0.0
    %111 = vmatpush.msra.mxu0 0.0
    %112 = vmatpush.msra.mxu0 0.0
    %113 = vmatpush.msra.mxu0 0.0
    %114 = vmatpush.msra.mxu0 %v93
    %115 = vmatpush.msra.mxu0 %v92
    %116 = vmatpush.msra.mxu0 %v91
    %117 = vmatpush.msra.mxu0 %v90
    %118 = vmatmul.f32.gmra.mxu0 %v100
    %v119 = vpop.f32.mrf.mxu0
    %v120 = vadd.f32 %v96, %v119
    %121 = vdwg.mxu0
    %vm122 = vcmask 254976
    %123 = vst.msk [vmem:[#allocation8] sm:$0x3] %vm122, %v120
    %v124 = vld [vmem:[#allocation7] sm:$0xff]
    %v125 = vld [vmem:[#allocation7 + $0x8] sm:$0xff]
    %v126 = vld [vmem:[#allocation7 + $0x10] sm:$0xff]
    %v127 = vld [vmem:[#allocation7 + $0x18] sm:$0xff]
    %v128 = vld [vmem:[%s4] sm:$0x1]
    %v130 = vperm.slane %v128, 0
    %132 = vmatpush.msra.mxu0 0.0
    %133 = vmatpush.msra.mxu0 0.0
    %134 = vmatpush.msra.mxu0 0.0
    %135 = vmatpush.msra.mxu0 0.0
    %136 = vmatpush.msra.mxu0 0.0
    %137 = vmatpush.msra.mxu0 0.0
    %138 = vmatpush.msra.mxu0 0.0
    %139 = vmatpush.msra.mxu0 0.0
    %140 = vmatpush.msra.mxu0 0.0
    %141 = vmatpush.msra.mxu0 0.0
    %142 = vmatpush.msra.mxu0 0.0
    %143 = vmatpush.msra.mxu0 0.0
    %144 = vmatpush.msra.mxu0 %v127
    %145 = vmatpush.msra.mxu0 %v126
    %146 = vmatpush.msra.mxu0 %v125
    %147 = vmatpush.msra.mxu0 %v124
    %148 = vmatmul.f32.gmra.mxu0 %v100
    %v149 = vpop.f32.mrf.mxu0
    %v150 = vadd.f32 %v130, %v149
    %151 = vdwg.mxu0
    %v152 = vadd.f32 %v150, 1.0
    %153 = vst.msk [vmem:[#allocation9] sm:$0x3] %vm122, %v152
    // Predicated region
    $region34: #{tpu_custom_call.1} parent=1 // pred_check
      _
    $region35: #{tpu_custom_call.1} parent=1 // pred_check_branch
      %155 = sbr.rel (0) target = $region37
    $region36: #{tpu_custom_call.1} parent=1 // pred_region
      %157 = vsyncadd [#allocation4], 0
      %s159 = sshll.u32 [#allocation8], 4
      %s160 = int_to_ptr.vmem [resolvable:$true] %s159
      %s161 = sshll.u32 %s5, 4
      %s162 = int_to_ptr.hbm [resolvable:$true] %s161
      %164 = dma.vmem_to_hbm [thread:$0]  %s160, 32, %s162, [#allocation4]
    $region37: #{tpu_custom_call.1} parent=1 // pred_fallthru
      _
    // Predicated region
    $region38: #{tpu_custom_call.1} parent=1 // pred_check
      _
    $region39: #{tpu_custom_call.1} parent=1 // pred_check_branch
      %166 = sbr.rel (0) target = $region41
    $region40: #{tpu_custom_call.1} parent=1 // pred_region
      %168 = vsyncadd [#allocation10], 0
      %s170 = sshll.u32 [#allocation9], 4
      %s171 = int_to_ptr.vmem [resolvable:$true] %s170
      %s172 = sshll.u32 %s6, 4
      %s173 = int_to_ptr.hbm [resolvable:$true] %s172
      %175 = dma.vmem_to_hbm [thread:$0]  %s171, 32, %s173, [#allocation10]
    $region41: #{tpu_custom_call.1} parent=1 // pred_fallthru
      _
    // Predicated region
    $region42: #{tpu_custom_call.1} parent=1 // pred_check
      _
    $region43: #{tpu_custom_call.1} parent=1 // pred_check_branch
      %177 = sbr.rel (0) target = $region45
    $region44: #{tpu_custom_call.1} parent=1 // pred_region
      %179 = dma.done [#allocation4], 32
    $region45: #{tpu_custom_call.1} parent=1 // pred_fallthru
      _
    // Predicated region
    $region46: #{tpu_custom_call.1} parent=1 // pred_check
      _
    $region47: #{tpu_custom_call.1} parent=1 // pred_check_branch
      %181 = sbr.rel (0) target = $region49
    $region48: #{tpu_custom_call.1} parent=1 // pred_region
      %183 = dma.done [#allocation10], 32
    $region49: #{tpu_custom_call.1} parent=1 // pred_fallthru
      _
    %184 = vsyncpa [#allocation3], 1
    %185 = vsyncpa [#allocation6], 1
    %186 = vsyncpa [#allocation4], 1
    %187 = vsyncpa [#allocation10], 1

</llo_original>
